<compile_context>
chip_gen: v5e
topology: v5e:2x2
jax: 0.10.0
libtpu: 0.0.40
codegen_flags: <defaults>
</compile_context>

<pallas_src>
import jax
import jax.numpy as jnp
from jax.experimental import pallas as pl
from jax.experimental.pallas import tpu as pltpu


# ----------------------------- single fused Pallas kernel -----------------------------

def _fused_resnet_kernel(x_ref, b1_ref, bias1_ref, b2_ref, bias2_ref,
                         b3_ref, bias3_ref, shift_ref, pool_p_ref, pool_s_ref,
                         fcw_ref, fcb_ref, feat_ref, cls_ref):
    f32 = jnp.float32

    def conv3x3(a, w_ref, bias_row, apply_relu, residual=None):
        # Row-layout conv.  a: (N*H, W*Cin).  w_ref[kh]: (W*Cin, W*Cout) block-
        # tridiagonal matrix for kernel row kh (horizontal taps + width padding
        # baked in).  Vertical taps / height padding are applied via the shared
        # (N*H, N*H) row-shift matrices; shift_ref[1] is the identity so the
        # middle tap is used directly.
        t0 = jnp.dot(a, w_ref[0], preferred_element_type=f32)
        t1 = jnp.dot(a, w_ref[1], preferred_element_type=f32)
        t2 = jnp.dot(a, w_ref[2], preferred_element_type=f32)
        acc = (jnp.dot(shift_ref[0], t0, preferred_element_type=f32)
               + t1
               + jnp.dot(shift_ref[2], t2, preferred_element_type=f32))
        acc = acc + bias_row
        if residual is not None:
            acc = acc + residual
        if apply_relu:
            acc = jnp.maximum(acc, 0.0)
        return acc

    x = x_ref[...]
    bias1 = bias1_ref[...]
    bias2 = bias2_ref[...]
    bias3 = bias3_ref[...]

    # named children: "conv1" then "relu"  -> a1 (also the residual into layer1)
    a1 = conv3x3(x, b1_ref, bias1, apply_relu=True)
    # "layer1" residual block: conv -> relu -> conv -> (+input) -> relu
    a2 = conv3x3(a1, b2_ref, bias2, apply_relu=True)
    a3 = conv3x3(a2, b3_ref, bias3, apply_relu=True, residual=a1)

    # extracted intermediate (output of "layer1"), stored lane-dense (N*H, W*C)
    feat_ref[...] = a3

    # "avgpool": per-image row sum then strided channel average, both as MXU matmuls
    rowsum = jnp.dot(pool_p_ref[...], a3, preferred_element_type=f32)       # (N, W*C)
    pooled = jnp.dot(rowsum, pool_s_ref[...], preferred_element_type=f32)   # (N, C)
    # "fc"
    logits = jnp.dot(pooled, fcw_ref[...], preferred_element_type=f32) + fcb_ref[...]

    # torch.argmax(F.softmax(logits, dim=1)): softmax per row, argmax over the
    # FLATTENED softmax tensor (no dim passed to argmax) -> single scalar index.
    m = jnp.max(logits, axis=1, keepdims=True)
    e = jnp.exp(logits - m)
    p = e / jnp.sum(e, axis=1, keepdims=True)
    nrow, ncls = p.shape
    row = jax.lax.broadcasted_iota(jnp.int32, (nrow, ncls), 0)
    col = jax.lax.broadcasted_iota(jnp.int32, (nrow, ncls), 1)
    flat_idx = row * ncls + col
    pmax = jnp.max(p)
    cand = jnp.where(p == pmax, flat_idx, jnp.int32(nrow * ncls))  # first max wins
    cls_ref[...] = jnp.min(cand).reshape(1, 1)


def _fused_forward_call(x_rows, kp, n, h, w, c):
    operands = (x_rows, kp["b1"], kp["bias1"], kp["b2"], kp["bias2"],
                kp["b3"], kp["bias3"], kp["shift"], kp["pool_p"], kp["pool_s"],
                kp["fc_w_t"], kp["fc_b"])
    feat_rows, cls = pl.pallas_call(
        _fused_resnet_kernel,
        out_shape=(jax.ShapeDtypeStruct((n * h, w * c), jnp.float32),
                   jax.ShapeDtypeStruct((1, 1), jnp.int32)),
        in_specs=[pl.BlockSpec(memory_space=pltpu.MemorySpace.VMEM)
                  for _ in operands],
        out_specs=(pl.BlockSpec(memory_space=pltpu.MemorySpace.VMEM),
                   pl.BlockSpec(memory_space=pltpu.MemorySpace.VMEM)),
    )(*operands)
    return feat_rows, cls


# ----------------------------- init-time weight preprocessing -----------------------------

def _banded_conv_mats(w_oihw, width):
    """PyTorch (Cout, Cin, 3, 3) -> (3, width*Cin, width*Cout) block-tridiagonal
    matrices, one per kernel row kh.  Horizontal taps and width zero-padding are
    baked into the band structure: B_kh[w_in*Cin+ci, w_out*Cout+co] =
    W[co, ci, kh, (w_in-w_out)+1] when |w_in - w_out| <= 1, else 0."""
    cout, cin, _, _ = w_oihw.shape
    w_in = jnp.arange(width)[:, None]       # (W, 1)
    w_out = jnp.arange(width)[None, :]      # (1, W)
    mats = []
    for kh in range(3):
        b = jnp.zeros((width, cin, width, cout), jnp.float32)
        for kw in range(3):
            sel = (w_in - w_out == (kw - 1)).astype(jnp.float32)   # (W, W)
            wt = jnp.transpose(w_oihw[:, :, kh, kw])               # (Cin, Cout)
            b = b + sel[:, None, :, None] * wt[None, :, None, :]
        mats.append(b.reshape(width * cin, width * cout))
    return jnp.stack(mats, axis=0)


def _row_shift_mats(n, h):
    """(3, n*h, n*h): S_kh[r_out, r_in] = 1 iff r_in == r_out + (kh-1) and both rows
    belong to the same image (vertical zero-padding handled by the band)."""
    r = jnp.arange(n * h)
    r_out = r[:, None]
    r_in = r[None, :]
    mats = []
    for kh in range(3):
        dh = kh - 1
        m = ((r_in == r_out + dh) & (r_in // h == r_out // h)).astype(jnp.float32)
        mats.append(m)
    return jnp.stack(mats, axis=0)


def init_params(key, cin=3, c1=8, nclass=10):
    ks = jax.random.split(key, 8)
    s = 0.1
    return {
        "conv1_w": s * jax.random.normal(ks[0], (c1, cin, 3, 3), jnp.float32),
        "conv1_b": s * jax.random.normal(ks[1], (c1,), jnp.float32),
        "l1a_w": s * jax.random.normal(ks[2], (c1, c1, 3, 3), jnp.float32),
        "l1a_b": s * jax.random.normal(ks[3], (c1,), jnp.float32),
        "l1b_w": s * jax.random.normal(ks[4], (c1, c1, 3, 3), jnp.float32),
        "l1b_b": s * jax.random.normal(ks[5], (c1,), jnp.float32),
        "fc_w": s * jax.random.normal(ks[6], (nclass, c1), jnp.float32),  # (out, in)
        "fc_b": s * jax.random.normal(ks[7], (nclass,), jnp.float32),
    }


def preprocess_params(params, n, h, w):
    """One-time (frozen weights) conversion into kernel-ready operands."""
    c1 = params["conv1_w"].shape[0]
    return {
        "b1": _banded_conv_mats(params["conv1_w"], w),
        "bias1": jnp.tile(params["conv1_b"], (w,)).reshape(1, w * c1),
        "b2": _banded_conv_mats(params["l1a_w"], w),
        "bias2": jnp.tile(params["l1a_b"], (w,)).reshape(1, w * c1),
        "b3": _banded_conv_mats(params["l1b_w"], w),
        "bias3": jnp.tile(params["l1b_b"], (w,)).reshape(1, w * c1),
        "shift": _row_shift_mats(n, h),
        "pool_p": (jnp.arange(n * h)[None, :] // h
                   == jnp.arange(n)[:, None]).astype(jnp.float32),          # (N, N*H)
        "pool_s": jnp.tile(jnp.eye(c1, dtype=jnp.float32), (w, 1)) / float(h * w),  # (W*C, C)
        "fc_w_t": params["fc_w"].T,                                          # (in, out)
        "fc_b": params["fc_b"].reshape(1, -1),
    }


# ----------------------------- forward (matches IntermediateRep) -----------------------------

def intermediate_rep_forward(kernel_params, x_nchw):
    # TODO(synk): the extraction point is fused at layer_to_extract="layer1"; other
    # extraction layers would require a different fusion split of the kernel.
    n, cin, h, w = x_nchw.shape
    c = kernel_params["bias1"].shape[1] // w
    # NCHW -> NHWC -> lane-dense row layout (N*H, W*Cin)
    x_rows = jnp.transpose(x_nchw, (0, 2, 3, 1)).reshape(n * h, w * cin)
    feat_rows, cls = _fused_forward_call(x_rows, kernel_params, n, h, w, c)
    # back to PyTorch NCHW for the extracted intermediate
    feat_nchw = feat_rows.reshape(n, h, w, c).transpose(0, 3, 1, 2)
    return feat_nchw, cls[0, 0]


# ----------------------------- main -----------------------------

if __name__ == "__main__":
    N, H, W, CIN, C1, NCLASS = 2, 16, 16, 3, 8, 10
    key = jax.random.PRNGKey(0)
    pkey, xkey = jax.random.split(key)

    params = init_params(pkey, cin=CIN, c1=C1, nclass=NCLASS)
    kparams = preprocess_params(params, N, H, W)     # hoisted, frozen-weight prep
    x = jax.random.normal(xkey, (N, CIN, H, W), jnp.float32)   # NCHW like PyTorch

    fwd = jax.jit(intermediate_rep_forward)
    feat, cls_idx = fwd(kparams, x)
    jax.block_until_ready(feat)
    jax.block_until_ready(cls_idx)

    assert feat.shape == (N, C1, H, W)
    assert cls_idx.dtype == jnp.int32
    print("KERNEL_OK")
</pallas_src>

<mosaic_0001>
module attributes {stable_mosaic.version = 11 : i64} {
  func.func @_fused_resnet_kernel(%arg0: memref<32x48xf32, #tpu.memory_space<vmem>>, %arg1: memref<3x48x128xf32, #tpu.memory_space<vmem>>, %arg2: memref<1x128xf32, #tpu.memory_space<vmem>>, %arg3: memref<3x128x128xf32, #tpu.memory_space<vmem>>, %arg4: memref<1x128xf32, #tpu.memory_space<vmem>>, %arg5: memref<3x128x128xf32, #tpu.memory_space<vmem>>, %arg6: memref<1x128xf32, #tpu.memory_space<vmem>>, %arg7: memref<3x32x32xf32, #tpu.memory_space<vmem>>, %arg8: memref<2x32xf32, #tpu.memory_space<vmem>>, %arg9: memref<128x8xf32, #tpu.memory_space<vmem>>, %arg10: memref<8x10xf32, #tpu.memory_space<vmem>>, %arg11: memref<1x10xf32, #tpu.memory_space<vmem>>, %arg12: memref<32x128xf32, #tpu.memory_space<vmem>>, %arg13: memref<1x1xi32, #tpu.memory_space<vmem>>) attributes {dimension_semantics = [], scalar_prefetch = 0 : i64, scratch_operands = 0 : i64, tpu.core_type = #tpu.core_type<tc>} {
    %c0 = arith.constant 0 : index
    %c0_0 = arith.constant 0 : index
    %0 = vector.load %arg0[%c0, %c0_0] : memref<32x48xf32, #tpu.memory_space<vmem>>, vector<32x48xf32>
    %c0_1 = arith.constant 0 : index
    %c0_2 = arith.constant 0 : index
    %1 = vector.load %arg2[%c0_1, %c0_2] : memref<1x128xf32, #tpu.memory_space<vmem>>, vector<1x128xf32>
    %c0_3 = arith.constant 0 : index
    %c0_4 = arith.constant 0 : index
    %2 = vector.load %arg4[%c0_3, %c0_4] : memref<1x128xf32, #tpu.memory_space<vmem>>, vector<1x128xf32>
    %c0_5 = arith.constant 0 : index
    %c0_6 = arith.constant 0 : index
    %3 = vector.load %arg6[%c0_5, %c0_6] : memref<1x128xf32, #tpu.memory_space<vmem>>, vector<1x128xf32>
    %c0_7 = arith.constant 0 : index
    %c0_8 = arith.constant 0 : index
    %c0_9 = arith.constant 0 : index
    %4 = vector.load %arg1[%c0_7, %c0_8, %c0_9] : memref<3x48x128xf32, #tpu.memory_space<vmem>>, vector<1x48x128xf32>
    %5 = vector.shape_cast %4 : vector<1x48x128xf32> to vector<48x128xf32>
    %cst = arith.constant dense<0.000000e+00> : vector<32x128xf32>
    %6 = tpu.matmul %0, %5, %cst {dimension_numbers = #tpu.dot_dimension_numbers<[1], [0], [0], [1], [0, 0, 1, 1], [], []>} : vector<32x48xf32>, vector<48x128xf32>, vector<32x128xf32> -> vector<32x128xf32>
    %c1 = arith.constant 1 : index
    %c0_10 = arith.constant 0 : index
    %c0_11 = arith.constant 0 : index
    %7 = vector.load %arg1[%c1, %c0_10, %c0_11] : memref<3x48x128xf32, #tpu.memory_space<vmem>>, vector<1x48x128xf32>
    %8 = vector.shape_cast %7 : vector<1x48x128xf32> to vector<48x128xf32>
    %cst_12 = arith.constant dense<0.000000e+00> : vector<32x128xf32>
    %9 = tpu.matmul %0, %8, %cst_12 {dimension_numbers = #tpu.dot_dimension_numbers<[1], [0], [0], [1], [0, 0, 1, 1], [], []>} : vector<32x48xf32>, vector<48x128xf32>, vector<32x128xf32> -> vector<32x128xf32>
    %c2 = arith.constant 2 : index
    %c0_13 = arith.constant 0 : index
    %c0_14 = arith.constant 0 : index
    %10 = vector.load %arg1[%c2, %c0_13, %c0_14] : memref<3x48x128xf32, #tpu.memory_space<vmem>>, vector<1x48x128xf32>
    %11 = vector.shape_cast %10 : vector<1x48x128xf32> to vector<48x128xf32>
    %cst_15 = arith.constant dense<0.000000e+00> : vector<32x128xf32>
    %12 = tpu.matmul %0, %11, %cst_15 {dimension_numbers = #tpu.dot_dimension_numbers<[1], [0], [0], [1], [0, 0, 1, 1], [], []>} : vector<32x48xf32>, vector<48x128xf32>, vector<32x128xf32> -> vector<32x128xf32>
    %c0_16 = arith.constant 0 : index
    %c0_17 = arith.constant 0 : index
    %c0_18 = arith.constant 0 : index
    %13 = vector.load %arg7[%c0_16, %c0_17, %c0_18] : memref<3x32x32xf32, #tpu.memory_space<vmem>>, vector<1x32x32xf32>
    %14 = vector.shape_cast %13 : vector<1x32x32xf32> to vector<32x32xf32>
    %cst_19 = arith.constant dense<0.000000e+00> : vector<32x128xf32>
    %15 = tpu.matmul %14, %6, %cst_19 {dimension_numbers = #tpu.dot_dimension_numbers<[1], [0], [0], [1], [0, 0, 1, 1], [], []>} : vector<32x32xf32>, vector<32x128xf32>, vector<32x128xf32> -> vector<32x128xf32>
    %16 = arith.addf %15, %9 : vector<32x128xf32>
    %c2_20 = arith.constant 2 : index
    %c0_21 = arith.constant 0 : index
    %c0_22 = arith.constant 0 : index
    %17 = vector.load %arg7[%c2_20, %c0_21, %c0_22] : memref<3x32x32xf32, #tpu.memory_space<vmem>>, vector<1x32x32xf32>
    %18 = vector.shape_cast %17 : vector<1x32x32xf32> to vector<32x32xf32>
    %cst_23 = arith.constant dense<0.000000e+00> : vector<32x128xf32>
    %19 = tpu.matmul %18, %12, %cst_23 {dimension_numbers = #tpu.dot_dimension_numbers<[1], [0], [0], [1], [0, 0, 1, 1], [], []>} : vector<32x32xf32>, vector<32x128xf32>, vector<32x128xf32> -> vector<32x128xf32>
    %20 = arith.addf %16, %19 : vector<32x128xf32>
    %21 = vector.broadcast %1 : vector<1x128xf32> to vector<32x128xf32>
    %22 = arith.addf %20, %21 : vector<32x128xf32>
    %cst_24 = arith.constant 0.000000e+00 : f32
    %23 = vector.broadcast %cst_24 : f32 to vector<32x128xf32>
    %24 = arith.maximumf %22, %23 : vector<32x128xf32>
    %c0_25 = arith.constant 0 : index
    %c0_26 = arith.constant 0 : index
    %c0_27 = arith.constant 0 : index
    %25 = vector.load %arg3[%c0_25, %c0_26, %c0_27] : memref<3x128x128xf32, #tpu.memory_space<vmem>>, vector<1x128x128xf32>
    %26 = vector.shape_cast %25 : vector<1x128x128xf32> to vector<128x128xf32>
    %cst_28 = arith.constant dense<0.000000e+00> : vector<32x128xf32>
    %27 = tpu.matmul %24, %26, %cst_28 {dimension_numbers = #tpu.dot_dimension_numbers<[1], [0], [0], [1], [0, 0, 1, 1], [], []>} : vector<32x128xf32>, vector<128x128xf32>, vector<32x128xf32> -> vector<32x128xf32>
    %c1_29 = arith.constant 1 : index
    %c0_30 = arith.constant 0 : index
    %c0_31 = arith.constant 0 : index
    %28 = vector.load %arg3[%c1_29, %c0_30, %c0_31] : memref<3x128x128xf32, #tpu.memory_space<vmem>>, vector<1x128x128xf32>
    %29 = vector.shape_cast %28 : vector<1x128x128xf32> to vector<128x128xf32>
    %cst_32 = arith.constant dense<0.000000e+00> : vector<32x128xf32>
    %30 = tpu.matmul %24, %29, %cst_32 {dimension_numbers = #tpu.dot_dimension_numbers<[1], [0], [0], [1], [0, 0, 1, 1], [], []>} : vector<32x128xf32>, vector<128x128xf32>, vector<32x128xf32> -> vector<32x128xf32>
    %c2_33 = arith.constant 2 : index
    %c0_34 = arith.constant 0 : index
    %c0_35 = arith.constant 0 : index
    %31 = vector.load %arg3[%c2_33, %c0_34, %c0_35] : memref<3x128x128xf32, #tpu.memory_space<vmem>>, vector<1x128x128xf32>
    %32 = vector.shape_cast %31 : vector<1x128x128xf32> to vector<128x128xf32>
    %cst_36 = arith.constant dense<0.000000e+00> : vector<32x128xf32>
    %33 = tpu.matmul %24, %32, %cst_36 {dimension_numbers = #tpu.dot_dimension_numbers<[1], [0], [0], [1], [0, 0, 1, 1], [], []>} : vector<32x128xf32>, vector<128x128xf32>, vector<32x128xf32> -> vector<32x128xf32>
    %c0_37 = arith.constant 0 : index
    %c0_38 = arith.constant 0 : index
    %c0_39 = arith.constant 0 : index
    %34 = vector.load %arg7[%c0_37, %c0_38, %c0_39] : memref<3x32x32xf32, #tpu.memory_space<vmem>>, vector<1x32x32xf32>
    %35 = vector.shape_cast %34 : vector<1x32x32xf32> to vector<32x32xf32>
    %cst_40 = arith.constant dense<0.000000e+00> : vector<32x128xf32>
    %36 = tpu.matmul %35, %27, %cst_40 {dimension_numbers = #tpu.dot_dimension_numbers<[1], [0], [0], [1], [0, 0, 1, 1], [], []>} : vector<32x32xf32>, vector<32x128xf32>, vector<32x128xf32> -> vector<32x128xf32>
    %37 = arith.addf %36, %30 : vector<32x128xf32>
    %c2_41 = arith.constant 2 : index
    %c0_42 = arith.constant 0 : index
    %c0_43 = arith.constant 0 : index
    %38 = vector.load %arg7[%c2_41, %c0_42, %c0_43] : memref<3x32x32xf32, #tpu.memory_space<vmem>>, vector<1x32x32xf32>
    %39 = vector.shape_cast %38 : vector<1x32x32xf32> to vector<32x32xf32>
    %cst_44 = arith.constant dense<0.000000e+00> : vector<32x128xf32>
    %40 = tpu.matmul %39, %33, %cst_44 {dimension_numbers = #tpu.dot_dimension_numbers<[1], [0], [0], [1], [0, 0, 1, 1], [], []>} : vector<32x32xf32>, vector<32x128xf32>, vector<32x128xf32> -> vector<32x128xf32>
    %41 = arith.addf %37, %40 : vector<32x128xf32>
    %42 = vector.broadcast %2 : vector<1x128xf32> to vector<32x128xf32>
    %43 = arith.addf %41, %42 : vector<32x128xf32>
    %cst_45 = arith.constant 0.000000e+00 : f32
    %44 = vector.broadcast %cst_45 : f32 to vector<32x128xf32>
    %45 = arith.maximumf %43, %44 : vector<32x128xf32>
    %c0_46 = arith.constant 0 : index
    %c0_47 = arith.constant 0 : index
    %c0_48 = arith.constant 0 : index
    %46 = vector.load %arg5[%c0_46, %c0_47, %c0_48] : memref<3x128x128xf32, #tpu.memory_space<vmem>>, vector<1x128x128xf32>
    %47 = vector.shape_cast %46 : vector<1x128x128xf32> to vector<128x128xf32>
    %cst_49 = arith.constant dense<0.000000e+00> : vector<32x128xf32>
    %48 = tpu.matmul %45, %47, %cst_49 {dimension_numbers = #tpu.dot_dimension_numbers<[1], [0], [0], [1], [0, 0, 1, 1], [], []>} : vector<32x128xf32>, vector<128x128xf32>, vector<32x128xf32> -> vector<32x128xf32>
    %c1_50 = arith.constant 1 : index
    %c0_51 = arith.constant 0 : index
    %c0_52 = arith.constant 0 : index
    %49 = vector.load %arg5[%c1_50, %c0_51, %c0_52] : memref<3x128x128xf32, #tpu.memory_space<vmem>>, vector<1x128x128xf32>
    %50 = vector.shape_cast %49 : vector<1x128x128xf32> to vector<128x128xf32>
    %cst_53 = arith.constant dense<0.000000e+00> : vector<32x128xf32>
    %51 = tpu.matmul %45, %50, %cst_53 {dimension_numbers = #tpu.dot_dimension_numbers<[1], [0], [0], [1], [0, 0, 1, 1], [], []>} : vector<32x128xf32>, vector<128x128xf32>, vector<32x128xf32> -> vector<32x128xf32>
    %c2_54 = arith.constant 2 : index
    %c0_55 = arith.constant 0 : index
    %c0_56 = arith.constant 0 : index
    %52 = vector.load %arg5[%c2_54, %c0_55, %c0_56] : memref<3x128x128xf32, #tpu.memory_space<vmem>>, vector<1x128x128xf32>
    %53 = vector.shape_cast %52 : vector<1x128x128xf32> to vector<128x128xf32>
    %cst_57 = arith.constant dense<0.000000e+00> : vector<32x128xf32>
    %54 = tpu.matmul %45, %53, %cst_57 {dimension_numbers = #tpu.dot_dimension_numbers<[1], [0], [0], [1], [0, 0, 1, 1], [], []>} : vector<32x128xf32>, vector<128x128xf32>, vector<32x128xf32> -> vector<32x128xf32>
    %c0_58 = arith.constant 0 : index
    %c0_59 = arith.constant 0 : index
    %c0_60 = arith.constant 0 : index
    %55 = vector.load %arg7[%c0_58, %c0_59, %c0_60] : memref<3x32x32xf32, #tpu.memory_space<vmem>>, vector<1x32x32xf32>
    %56 = vector.shape_cast %55 : vector<1x32x32xf32> to vector<32x32xf32>
    %cst_61 = arith.constant dense<0.000000e+00> : vector<32x128xf32>
    %57 = tpu.matmul %56, %48, %cst_61 {dimension_numbers = #tpu.dot_dimension_numbers<[1], [0], [0], [1], [0, 0, 1, 1], [], []>} : vector<32x32xf32>, vector<32x128xf32>, vector<32x128xf32> -> vector<32x128xf32>
    %58 = arith.addf %57, %51 : vector<32x128xf32>
    %c2_62 = arith.constant 2 : index
    %c0_63 = arith.constant 0 : index
    %c0_64 = arith.constant 0 : index
    %59 = vector.load %arg7[%c2_62, %c0_63, %c0_64] : memref<3x32x32xf32, #tpu.memory_space<vmem>>, vector<1x32x32xf32>
    %60 = vector.shape_cast %59 : vector<1x32x32xf32> to vector<32x32xf32>
    %cst_65 = arith.constant dense<0.000000e+00> : vector<32x128xf32>
    %61 = tpu.matmul %60, %54, %cst_65 {dimension_numbers = #tpu.dot_dimension_numbers<[1], [0], [0], [1], [0, 0, 1, 1], [], []>} : vector<32x32xf32>, vector<32x128xf32>, vector<32x128xf32> -> vector<32x128xf32>
    %62 = arith.addf %58, %61 : vector<32x128xf32>
    %63 = vector.broadcast %3 : vector<1x128xf32> to vector<32x128xf32>
    %64 = arith.addf %62, %63 : vector<32x128xf32>
    %65 = arith.addf %64, %24 : vector<32x128xf32>
    %cst_66 = arith.constant 0.000000e+00 : f32
    %66 = vector.broadcast %cst_66 : f32 to vector<32x128xf32>
    %67 = arith.maximumf %65, %66 : vector<32x128xf32>
    %c0_67 = arith.constant 0 : index
    %c0_68 = arith.constant 0 : index
    %68 = vector.load %arg12[%c0_67, %c0_68] : memref<32x128xf32, #tpu.memory_space<vmem>>, vector<32x128xf32>
    tpu.vector_store %arg12[%c0_67, %c0_68], %67 {strides = array<i32>} : memref<32x128xf32, #tpu.memory_space<vmem>>, vector<32x128xf32>,
    %c0_69 = arith.constant 0 : index
    %c0_70 = arith.constant 0 : index
    %69 = vector.load %arg8[%c0_69, %c0_70] : memref<2x32xf32, #tpu.memory_space<vmem>>, vector<2x32xf32>
    %cst_71 = arith.constant dense<0.000000e+00> : vector<2x128xf32>
    %70 = tpu.matmul %69, %67, %cst_71 {dimension_numbers = #tpu.dot_dimension_numbers<[1], [0], [0], [1], [0, 0, 1, 1], [], []>} : vector<2x32xf32>, vector<32x128xf32>, vector<2x128xf32> -> vector<2x128xf32>
    %c0_72 = arith.constant 0 : index
    %c0_73 = arith.constant 0 : index
    %71 = vector.load %arg9[%c0_72, %c0_73] : memref<128x8xf32, #tpu.memory_space<vmem>>, vector<128x8xf32>
    %cst_74 = arith.constant dense<0.000000e+00> : vector<2x8xf32>
    %72 = tpu.matmul %70, %71, %cst_74 {dimension_numbers = #tpu.dot_dimension_numbers<[1], [0], [0], [1], [0, 0, 1, 1], [], []>} : vector<2x128xf32>, vector<128x8xf32>, vector<2x8xf32> -> vector<2x8xf32>
    %c0_75 = arith.constant 0 : index
    %c0_76 = arith.constant 0 : index
    %73 = vector.load %arg10[%c0_75, %c0_76] : memref<8x10xf32, #tpu.memory_space<vmem>>, vector<8x10xf32>
    %cst_77 = arith.constant dense<0.000000e+00> : vector<2x10xf32>
    %74 = tpu.matmul %72, %73, %cst_77 {dimension_numbers = #tpu.dot_dimension_numbers<[1], [0], [0], [1], [0, 0, 1, 1], [], []>} : vector<2x8xf32>, vector<8x10xf32>, vector<2x10xf32> -> vector<2x10xf32>
    %c0_78 = arith.constant 0 : index
    %c0_79 = arith.constant 0 : index
    %75 = vector.load %arg11[%c0_78, %c0_79] : memref<1x10xf32, #tpu.memory_space<vmem>>, vector<1x10xf32>
    %76 = vector.broadcast %75 : vector<1x10xf32> to vector<2x10xf32>
    %77 = arith.addf %74, %76 : vector<2x10xf32>
    %cst_80 = arith.constant dense<0xFF800000> : vector<2xf32>
    %78 = vector.multi_reduction <maximumf>, %77, %cst_80 [1] : vector<2x10xf32> to vector<2xf32>
    %79 = vector.shape_cast %78 : vector<2xf32> to vector<2x1xf32>
    %80 = vector.broadcast %79 : vector<2x1xf32> to vector<2x10xf32>
    %81 = arith.subf %77, %80 : vector<2x10xf32>
    %82 = math.exp %81 : vector<2x10xf32>
    %cst_81 = arith.constant dense<0.000000e+00> : vector<2xf32>
    %83 = vector.multi_reduction <add>, %82, %cst_81 [1] : vector<2x10xf32> to vector<2xf32>
    %84 = vector.shape_cast %83 : vector<2xf32> to vector<2x1xf32>
    %85 = vector.broadcast %84 : vector<2x1xf32> to vector<2x10xf32>
    %86 = arith.divf %82, %85 : vector<2x10xf32>
    %87 = tpu.iota {dimensions = array<i32: 0>} : vector<2x10xi32>
    %88 = tpu.iota {dimensions = array<i32: 1>} : vector<2x10xi32>
    %c10_i32 = arith.constant 10 : i32
    %89 = vector.broadcast %c10_i32 : i32 to vector<2x10xi32>
    %90 = arith.muli %87, %89 : vector<2x10xi32>
    %91 = arith.addi %90, %88 : vector<2x10xi32>
    %92 = vector.shape_cast %86 : vector<2x10xf32> to vector<1x2x10xf32>
    %cst_82 = arith.constant dense<0xFF800000> : vector<1xf32>
    %93 = vector.multi_reduction <maximumf>, %92, %cst_82 [1, 2] : vector<1x2x10xf32> to vector<1xf32>
    %94 = vector.shape_cast %93 : vector<1xf32> to vector<1x1x1xf32>
    %95 = vector.extract %94[0, 0, 0] : f32 from vector<1x1x1xf32>
    %96 = vector.broadcast %95 : f32 to vector<2x10xf32>
    %97 = arith.cmpf oeq, %86, %96 : vector<2x10xf32>
    %c20_i32 = arith.constant 20 : i32
    %98 = vector.broadcast %c20_i32 : i32 to vector<2x10xi32>
    %99 = arith.select %97, %91, %98 : vector<2x10xi1>, vector<2x10xi32>
    %100 = vector.shape_cast %99 : vector<2x10xi32> to vector<1x2x10xi32>
    %cst_83 = arith.constant dense<2147483647> : vector<1xi32>
    %101 = vector.multi_reduction <minsi>, %100, %cst_83 [1, 2] : vector<1x2x10xi32> to vector<1xi32>
    %102 = vector.shape_cast %101 : vector<1xi32> to vector<1x1x1xi32>
    %103 = vector.extract %102[0, 0, 0] : i32 from vector<1x1x1xi32>
    %104 = vector.broadcast %103 : i32 to vector<1x1xi32>
    %c0_84 = arith.constant 0 : index
    %c0_85 = arith.constant 0 : index
    %105 = vector.load %arg13[%c0_84, %c0_85] : memref<1x1xi32, #tpu.memory_space<vmem>>, vector<1x1xi32>
    tpu.vector_store %arg13[%c0_84, %c0_85], %104 {strides = array<i32>} : memref<1x1xi32, #tpu.memory_space<vmem>>, vector<1x1xi32>,
    return
  }
}

</mosaic_0001>

<llo_original>
// kernel: intermediate_rep_forward.1
$region0: #{intermediate_rep_forward.1}
  #allocation0 [shape = 'u32[]', space=smem, size = 0x4, offset = 0x4, fixed_abs, tag = 'smem constant byte address 0x4 - core index']
  #allocation1 [shape = 'u32[72,128]{1,0:T(1,128)}', space=vmem, size = 0x9000, scoped, tag = 'internal scratch']
  %s0 = inlined_call_operand.vmem [shape: f32[32,48], index: 0, kind: input, shape index: {}]
  %s1 = inlined_call_operand.vmem [shape: f32[3,48,128], index: 1, kind: input, shape index: {}]
  %s2 = inlined_call_operand.vmem [shape: f32[1,128], index: 2, kind: input, shape index: {}]
  %s3 = inlined_call_operand.vmem [shape: f32[3,128,128], index: 3, kind: input, shape index: {}]
  %s4 = inlined_call_operand.vmem [shape: f32[1,128], index: 4, kind: input, shape index: {}]
  %s5 = inlined_call_operand.hbm [shape: f32[3,128,128], index: 5, kind: input, shape index: {}]
  %s6 = inlined_call_operand.vmem [shape: f32[1,128], index: 6, kind: input, shape index: {}]
  %s7 = inlined_call_operand.hbm [shape: f32[3,32,32], index: 7, kind: input, shape index: {}]
  %s8 = inlined_call_operand.vmem [shape: f32[2,32], index: 8, kind: input, shape index: {}]
  %s9 = inlined_call_operand.vmem [shape: f32[128,8], index: 9, kind: input, shape index: {}]
  %s10 = inlined_call_operand.vmem [shape: f32[8,10], index: 10, kind: input, shape index: {}]
  %s11 = inlined_call_operand.vmem [shape: f32[1,10], index: 11, kind: input, shape index: {}]
  %s12 = inlined_call_operand.vmem [shape: f32[32,128], index: 12, kind: output, shape index: {0}]
  %s13 = inlined_call_operand.hbm [shape: s32[1,1], index: 13, kind: output, shape index: {1}]
  %14 = xla_tuple %s12, %s13
  %s15 = sld [smem:[#allocation0]]
  $region74: #{intermediate_rep_forward.1} parent=0
    _
  %s17 = ssub.s32 1, %s15
  %s18 = scalar_select 0, %s17, %s15
  $region1: #{intermediate_rep_forward.1} parent=0
    #allocation2 [shape = 'u8[196608]{0}', space=vmem, size = 0x30000, scoped, tag = 'input window, operand 5, single buffered']
    #allocation3 [shape = 's32[1]{0}', space=sflag, size = 0x4, scoped, tag = 'scoped memory for intermediate_rep_forward.1']
    #allocation4 [shape = 's32[1]{0}', space=sflag, size = 0x4, scoped, tag = 'scoped memory for intermediate_rep_forward.1']
    #allocation5 [shape = 'u8[49152]{0}', space=vmem, size = 0xc000, scoped, tag = 'input window, operand 7, single buffered']
    #allocation6 [shape = 's32[1]{0}', space=sflag, size = 0x4, scoped, tag = 'scoped memory for intermediate_rep_forward.1']
    #allocation7 [shape = 'u8[512]{0}', space=vmem, size = 0x400, scoped, tag = 'output window, operand 1, single buffered']
    %19 = vsyncpa [#allocation3], 0
    %20 = vsyncpa [#allocation6], 0
    %21 = vsyncpa [#allocation4], 0
    // Predicated region
    $region2: #{intermediate_rep_forward.1} parent=1 // pred_check
      _
    $region3: #{intermediate_rep_forward.1} parent=1 // pred_check_branch
      %23 = sbr.rel (0) target = $region5
    $region4: #{intermediate_rep_forward.1} parent=1 // pred_region
      _
    $region5: #{intermediate_rep_forward.1} parent=1 // pred_fallthru
      _
    // Predicated region
    $region6: #{intermediate_rep_forward.1} parent=1 // pred_check
      _
    $region7: #{intermediate_rep_forward.1} parent=1 // pred_check_branch
      %25 = sbr.rel (0) target = $region9
    $region8: #{intermediate_rep_forward.1} parent=1 // pred_region
      _
    $region9: #{intermediate_rep_forward.1} parent=1 // pred_fallthru
      _
    // Predicated region
    $region10: #{intermediate_rep_forward.1} parent=1 // pred_check
      _
    $region11: #{intermediate_rep_forward.1} parent=1 // pred_check_branch
      %27 = sbr.rel (0) target = $region13
    $region12: #{intermediate_rep_forward.1} parent=1 // pred_region
      _
    $region13: #{intermediate_rep_forward.1} parent=1 // pred_fallthru
      _
    // Predicated region
    $region14: #{intermediate_rep_forward.1} parent=1 // pred_check
      _
    $region15: #{intermediate_rep_forward.1} parent=1 // pred_check_branch
      %29 = sbr.rel (0) target = $region17
    $region16: #{intermediate_rep_forward.1} parent=1 // pred_region
      _
    $region17: #{intermediate_rep_forward.1} parent=1 // pred_fallthru
      _
    // Predicated region
    $region18: #{intermediate_rep_forward.1} parent=1 // pred_check
      _
    $region19: #{intermediate_rep_forward.1} parent=1 // pred_check_branch
      %31 = sbr.rel (0) target = $region21
    $region20: #{intermediate_rep_forward.1} parent=1 // pred_region
      _
    $region21: #{intermediate_rep_forward.1} parent=1 // pred_fallthru
      _
    // Predicated region
    $region22: #{intermediate_rep_forward.1} parent=1 // pred_check
      _
    $region23: #{intermediate_rep_forward.1} parent=1 // pred_check_branch
      %33 = sbr.rel (0) target = $region25
    $region24: #{intermediate_rep_forward.1} parent=1 // pred_region
      %35 = vsyncadd [#allocation3], 0
      %s36 = sshll.u32 %s5, 4
      %s37 = int_to_ptr.hbm [resolvable:$true] %s36
      %s38 = sshll.u32 [#allocation2], 4
      %s39 = int_to_ptr.vmem [resolvable:$true] %s38
      %44 = dma.hbm_to_vmem [thread:$0]  %s37, 6144, %s39, [#allocation3], 128, 128, 8
    $region25: #{intermediate_rep_forward.1} parent=1 // pred_fallthru
      _
    // Predicated region
    $region26: #{intermediate_rep_forward.1} parent=1 // pred_check
      _
    $region27: #{intermediate_rep_forward.1} parent=1 // pred_check_branch
      %46 = sbr.rel (0) target = $region29
    $region28: #{intermediate_rep_forward.1} parent=1 // pred_region
      _
    $region29: #{intermediate_rep_forward.1} parent=1 // pred_fallthru
      _
    // Predicated region
    $region30: #{intermediate_rep_forward.1} parent=1 // pred_check
      _
    $region31: #{intermediate_rep_forward.1} parent=1 // pred_check_branch
      %48 = sbr.rel (0) target = $region33
    $region32: #{intermediate_rep_forward.1} parent=1 // pred_region
      %50 = vsyncadd [#allocation6], 0
      %s51 = sshll.u32 %s7, 4
      %s52 = int_to_ptr.hbm [resolvable:$true] %s51
      %s53 = sshll.u32 [#allocation5], 4
      %s54 = int_to_ptr.vmem [resolvable:$true] %s53
      %59 = dma.hbm_to_vmem [thread:$0]  %s52, 1536, %s54, [#allocation6], 128, 128, 8
    $region33: #{intermediate_rep_forward.1} parent=1 // pred_fallthru
      _
    // Predicated region
    $region34: #{intermediate_rep_forward.1} parent=1 // pred_check
      _
    $region35: #{intermediate_rep_forward.1} parent=1 // pred_check_branch
      %61 = sbr.rel (0) target = $region37
    $region36: #{intermediate_rep_forward.1} parent=1 // pred_region
      _
    $region37: #{intermediate_rep_forward.1} parent=1 // pred_fallthru
      _
    // Predicated region
    $region38: #{intermediate_rep_forward.1} parent=1 // pred_check
      _
    $region39: #{intermediate_rep_forward.1} parent=1 // pred_check_branch
      %63 = sbr.rel (0) target = $region41
    $region40: #{intermediate_rep_forward.1} parent=1 // pred_region
      _
    $region41: #{intermediate_rep_forward.1} parent=1 // pred_fallthru
      _
    // Predicated region
    $region42: #{intermediate_rep_forward.1} parent=1 // pred_check
      _
    $region43: #{intermediate_rep_forward.1} parent=1 // pred_check_branch
      %65 = sbr.rel (0) target = $region45
    $region44: #{intermediate_rep_forward.1} parent=1 // pred_region
      _
    $region45: #{intermediate_rep_forward.1} parent=1 // pred_fallthru
      _
    // Predicated region
    $region46: #{intermediate_rep_forward.1} parent=1 // pred_check
      _
    $region47: #{intermediate_rep_forward.1} parent=1 // pred_check_branch
      %67 = sbr.rel (0) target = $region49
    $region48: #{intermediate_rep_forward.1} parent=1 // pred_region
      _
    $region49: #{intermediate_rep_forward.1} parent=1 // pred_fallthru
      _
    // Predicated region
    $region50: #{intermediate_rep_forward.1} parent=1 // pred_check
      _
    $region51: #{intermediate_rep_forward.1} parent=1 // pred_check_branch
      %69 = sbr.rel (0) target = $region53
    $region52: #{intermediate_rep_forward.1} parent=1 // pred_region
      %71 = dma.done [#allocation3], 6144
    $region53: #{intermediate_rep_forward.1} parent=1 // pred_fallthru
      _
    // Predicated region
    $region54: #{intermediate_rep_forward.1} parent=1 // pred_check
      _
    $region55: #{intermediate_rep_forward.1} parent=1 // pred_check_branch
      %73 = sbr.rel (0) target = $region57
    $region56: #{intermediate_rep_forward.1} parent=1 // pred_region
      %75 = dma.done [#allocation6], 1536
    $region57: #{intermediate_rep_forward.1} parent=1 // pred_fallthru
      _
    %v76 = vld [vmem:[%s0] sm:$0xff]
    %v77 = vld [vmem:[%s0 + $0x8] sm:$0xff]
    %v78 = vld [vmem:[%s0 + $0x10] sm:$0xff]
    %v79 = vld [vmem:[%s0 + $0x18] sm:$0xff]
    %v80 = vld [vmem:[%s2] sm:$0x1]
    %v81 = vld [vmem:[%s4] sm:$0x1]
    %v82 = vld [vmem:[%s6] sm:$0x1]
    %v83 = vld [vmem:[%s1] sm:$0xff]
    %v84 = vld [vmem:[%s1 + $0x8] sm:$0xff]
    %v85 = vld [vmem:[%s1 + $0x10] sm:$0xff]
    %v86 = vld [vmem:[%s1 + $0x18] sm:$0xff]
    %v87 = vld [vmem:[%s1 + $0x20] sm:$0xff]
    %v88 = vld [vmem:[%s1 + $0x28] sm:$0xff]
    %vm89 = vcmask 392192
    %v91 = vsel %vm89, %v76, 0
    %v94 = vsel %vm89, %v77, 0
    %v97 = vsel %vm89, %v78, 0
    %v100 = vsel %vm89, %v79, 0
    %102 = vmatpush.msra.mxu0 0.0
    %103 = vmatpush.msra.mxu0 0.0
    %104 = vmatpush.msra.mxu0 0.0
    %105 = vmatpush.msra.mxu0 0.0
    %106 = vmatpush.msra.mxu0 0.0
    %107 = vmatpush.msra.mxu0 0.0
    %108 = vmatpush.msra.mxu0 0.0
    %109 = vmatpush.msra.mxu0 0.0
    %110 = vmatpush.msra.mxu0 0.0
    %111 = vmatpush.msra.mxu0 0.0
    %112 = vmatpush.msra.mxu0 %v88
    %113 = vmatpush.msra.mxu0 %v87
    %114 = vmatpush.msra.mxu0 %v86
    %115 = vmatpush.msra.mxu0 %v85
    %116 = vmatpush.msra.mxu0 %v84
    %117 = vmatpush.msra.mxu0 %v83
    %118 = vmatmul.f32.gmra.mxu0 %v91
    %v119 = vpop.f32.mrf.mxu0
    %v120 = vadd.f32 0.0, %v119
    %121 = vmatmul.f32.gmra.mxu0 %v94
    %v122 = vpop.f32.mrf.mxu0
    %v123 = vadd.f32 0.0, %v122
    %124 = vmatmul.f32.gmra.mxu0 %v97
    %v125 = vpop.f32.mrf.mxu0
    %v126 = vadd.f32 0.0, %v125
    %127 = vmatmul.f32.gmra.mxu0 %v100
    %v128 = vpop.f32.mrf.mxu0
    %v129 = vadd.f32 0.0, %v128
    %130 = vdwg.mxu0
    %s131 = scalar_lea.vmem %s1, 48
    %v132 = vld [vmem:[%s131] sm:$0xff]
    %v133 = vld [vmem:[%s131 + $0x8] sm:$0xff]
    %v134 = vld [vmem:[%s131 + $0x10] sm:$0xff]
    %v135 = vld [vmem:[%s131 + $0x18] sm:$0xff]
    %v136 = vld [vmem:[%s131 + $0x20] sm:$0xff]
    %v137 = vld [vmem:[%s131 + $0x28] sm:$0xff]
    %138 = vmatpush.msra.mxu0 0.0
    %139 = vmatpush.msra.mxu0 0.0
    %140 = vmatpush.msra.mxu0 0.0
    %141 = vmatpush.msra.mxu0 0.0
    %142 = vmatpush.msra.mxu0 0.0
    %143 = vmatpush.msra.mxu0 0.0
    %144 = vmatpush.msra.mxu0 0.0
    %145 = vmatpush.msra.mxu0 0.0
    %146 = vmatpush.msra.mxu0 0.0
    %147 = vmatpush.msra.mxu0 0.0
    %148 = vmatpush.msra.mxu0 %v137
    %149 = vmatpush.msra.mxu0 %v136
    %150 = vmatpush.msra.mxu0 %v135
    %151 = vmatpush.msra.mxu0 %v134
    %152 = vmatpush.msra.mxu0 %v133
    %153 = vmatpush.msra.mxu0 %v132
    %154 = vmatmul.f32.gmra.mxu0 %v91
    %v155 = vpop.f32.mrf.mxu0
    %v156 = vadd.f32 0.0, %v155
    %157 = vmatmul.f32.gmra.mxu0 %v94
    %v158 = vpop.f32.mrf.mxu0
    %v159 = vadd.f32 0.0, %v158
    %160 = vmatmul.f32.gmra.mxu0 %v97
    %v161 = vpop.f32.mrf.mxu0
    %v162 = vadd.f32 0.0, %v161
    %163 = vmatmul.f32.gmra.mxu0 %v100
    %v164 = vpop.f32.mrf.mxu0
    %v165 = vadd.f32 0.0, %v164
    %166 = vdwg.mxu0
    %s167 = scalar_lea.vmem %s1, 96
    %v168 = vld [vmem:[%s167] sm:$0xff]
    %v169 = vld [vmem:[%s167 + $0x8] sm:$0xff]
    %v170 = vld [vmem:[%s167 + $0x10] sm:$0xff]
    %v171 = vld [vmem:[%s167 + $0x18] sm:$0xff]
    %v172 = vld [vmem:[%s167 + $0x20] sm:$0xff]
    %v173 = vld [vmem:[%s167 + $0x28] sm:$0xff]
    %174 = vmatpush.msra.mxu0 0.0
    %175 = vmatpush.msra.mxu0 0.0
    %176 = vmatpush.msra.mxu0 0.0
    %177 = vmatpush.msra.mxu0 0.0
    %178 = vmatpush.msra.mxu0 0.0
    %179 = vmatpush.msra.mxu0 0.0
    %180 = vmatpush.msra.mxu0 0.0
    %181 = vmatpush.msra.mxu0 0.0
    %182 = vmatpush.msra.mxu0 0.0
    %183 = vmatpush.msra.mxu0 0.0
    %184 = vmatpush.msra.mxu0 %v173
    %185 = vmatpush.msra.mxu0 %v172
    %186 = vmatpush.msra.mxu0 %v171
    %187 = vmatpush.msra.mxu0 %v170
    %188 = vmatpush.msra.mxu0 %v169
    %189 = vmatpush.msra.mxu0 %v168
    %190 = vmatmul.f32.gmra.mxu0 %v91
    %v191 = vpop.f32.mrf.mxu0
    %v192 = vadd.f32 0.0, %v191
    %193 = vmatmul.f32.gmra.mxu0 %v94
    %v194 = vpop.f32.mrf.mxu0
    %v195 = vadd.f32 0.0, %v194
    %196 = vmatmul.f32.gmra.mxu0 %v97
    %v197 = vpop.f32.mrf.mxu0
    %v198 = vadd.f32 0.0, %v197
    %199 = vmatmul.f32.gmra.mxu0 %v100
    %v200 = vpop.f32.mrf.mxu0
    %v201 = vadd.f32 0.0, %v200
    %202 = vdwg.mxu0
    %v203 = vld [vmem:[#allocation5] sm:$0xff]
    %v204 = vld [vmem:[#allocation5 + $0x8] sm:$0xff]
    %v205 = vld [vmem:[#allocation5 + $0x10] sm:$0xff]
    %v206 = vld [vmem:[#allocation5 + $0x18] sm:$0xff]
    %vm207 = vcmask 261120
    %v209 = vsel %vm207, %v203, 0
    %v212 = vsel %vm207, %v204, 0
    %v215 = vsel %vm207, %v205, 0
    %v218 = vsel %vm207, %v206, 0
    %220 = vmatpush.msra.mxu0 0.0
    %221 = vmatpush.msra.mxu0 0.0
    %222 = vmatpush.msra.mxu0 0.0
    %223 = vmatpush.msra.mxu0 0.0
    %224 = vmatpush.msra.mxu0 0.0
    %225 = vmatpush.msra.mxu0 0.0
    %226 = vmatpush.msra.mxu0 0.0
    %227 = vmatpush.msra.mxu0 0.0
    %228 = vmatpush.msra.mxu0 0.0
    %229 = vmatpush.msra.mxu0 0.0
    %230 = vmatpush.msra.mxu0 0.0
    %231 = vmatpush.msra.mxu0 0.0
    %232 = vmatpush.msra.mxu0 %v129
    %233 = vmatpush.msra.mxu0 %v126
    %234 = vmatpush.msra.mxu0 %v123
    %235 = vmatpush.msra.mxu0 %v120
    %236 = vmatmul.f32.gmra.mxu0 %v209
    %v237 = vpop.f32.mrf.mxu0
    %v238 = vadd.f32 %v156, %v237
    %239 = vmatmul.f32.gmra.mxu0 %v212
    %v240 = vpop.f32.mrf.mxu0
    %v241 = vadd.f32 %v159, %v240
    %242 = vmatmul.f32.gmra.mxu0 %v215
    %v243 = vpop.f32.mrf.mxu0
    %v244 = vadd.f32 %v162, %v243
    %245 = vmatmul.f32.gmra.mxu0 %v218
    %v246 = vpop.f32.mrf.mxu0
    %v247 = vadd.f32 %v165, %v246
    %248 = vdwg.mxu0
    %s249 = scalar_lea.vmem [#allocation5], 64
    %v250 = vld [vmem:[%s249] sm:$0xff]
    %v251 = vld [vmem:[%s249 + $0x8] sm:$0xff]
    %v252 = vld [vmem:[%s249 + $0x10] sm:$0xff]
    %v253 = vld [vmem:[%s249 + $0x18] sm:$0xff]
    %v255 = vsel %vm207, %v250, 0
    %v258 = vsel %vm207, %v251, 0
    %v261 = vsel %vm207, %v252, 0
    %v264 = vsel %vm207, %v253, 0
    %266 = vmatpush.msra.mxu0 0.0
    %267 = vmatpush.msra.mxu0 0.0
    %268 = vmatpush.msra.mxu0 0.0
    %269 = vmatpush.msra.mxu0 0.0
    %270 = vmatpush.msra.mxu0 0.0
    %271 = vmatpush.msra.mxu0 0.0
    %272 = vmatpush.msra.mxu0 0.0
    %273 = vmatpush.msra.mxu0 0.0
    %274 = vmatpush.msra.mxu0 0.0
    %275 = vmatpush.msra.mxu0 0.0
    %276 = vmatpush.msra.mxu0 0.0
    %277 = vmatpush.msra.mxu0 0.0
    %278 = vmatpush.msra.mxu0 %v201
    %279 = vmatpush.msra.mxu0 %v198
    %280 = vmatpush.msra.mxu0 %v195
    %281 = vmatpush.msra.mxu0 %v192
    %282 = vmatmul.f32.gmra.mxu0 %v255
    %v283 = vpop.f32.mrf.mxu0
    %v284 = vadd.f32 0.0, %v283
    %285 = vmatmul.f32.gmra.mxu0 %v258
    %v286 = vpop.f32.mrf.mxu0
    %v287 = vadd.f32 0.0, %v286
    %288 = vmatmul.f32.gmra.mxu0 %v261
    %v289 = vpop.f32.mrf.mxu0
    %v290 = vadd.f32 0.0, %v289
    %291 = vmatmul.f32.gmra.mxu0 %v264
    %v292 = vpop.f32.mrf.mxu0
    %v293 = vadd.f32 0.0, %v292
    %294 = vdwg.mxu0
    %v295 = vadd.f32 %v238, %v284
    %v296 = vadd.f32 %v241, %v287
    %v297 = vadd.f32 %v244, %v290
    %v298 = vadd.f32 %v247, %v293
    %v300 = vperm.slane %v80, 0
    %v302 = vadd.f32 %v295, %v300
    %v303 = vadd.f32 %v296, %v300
    %v304 = vadd.f32 %v297, %v300
    %v305 = vadd.f32 %v298, %v300
    %v306 = vmax.f32 %v302, 0.0
    %v307 = vmax.f32 %v303, 0.0
    %v308 = vmax.f32 %v304, 0.0
    %v309 = vmax.f32 %v305, 0.0
    %v310 = vld [vmem:[%s3] sm:$0xff]
    %v311 = vld [vmem:[%s3 + $0x8] sm:$0xff]
    %v312 = vld [vmem:[%s3 + $0x10] sm:$0xff]
    %v313 = vld [vmem:[%s3 + $0x18] sm:$0xff]
    %v314 = vld [vmem:[%s3 + $0x20] sm:$0xff]
    %v315 = vld [vmem:[%s3 + $0x28] sm:$0xff]
    %v316 = vld [vmem:[%s3 + $0x30] sm:$0xff]
    %v317 = vld [vmem:[%s3 + $0x38] sm:$0xff]
    %v318 = vld [vmem:[%s3 + $0x40] sm:$0xff]
    %v319 = vld [vmem:[%s3 + $0x48] sm:$0xff]
    %v320 = vld [vmem:[%s3 + $0x50] sm:$0xff]
    %v321 = vld [vmem:[%s3 + $0x58] sm:$0xff]
    %v322 = vld [vmem:[%s3 + $0x60] sm:$0xff]
    %v323 = vld [vmem:[%s3 + $0x68] sm:$0xff]
    %v324 = vld [vmem:[%s3 + $0x70] sm:$0xff]
    %v325 = vld [vmem:[%s3 + $0x78] sm:$0xff]
    %326 = vmatpush.msra.mxu0 %v325
    %327 = vmatpush.msra.mxu0 %v324
    %328 = vmatpush.msra.mxu0 %v323
    %329 = vmatpush.msra.mxu0 %v322
    %330 = vmatpush.msra.mxu0 %v321
    %331 = vmatpush.msra.mxu0 %v320
    %332 = vmatpush.msra.mxu0 %v319
    %333 = vmatpush.msra.mxu0 %v318
    %334 = vmatpush.msra.mxu0 %v317
    %335 = vmatpush.msra.mxu0 %v316
    %336 = vmatpush.msra.mxu0 %v315
    %337 = vmatpush.msra.mxu0 %v314
    %338 = vmatpush.msra.mxu0 %v313
    %339 = vmatpush.msra.mxu0 %v312
    %340 = vmatpush.msra.mxu0 %v311
    %341 = vmatpush.msra.mxu0 %v310
    %342 = vmatmul.f32.gmra.mxu0 %v306
    %v343 = vpop.f32.mrf.mxu0
    %v344 = vadd.f32 0.0, %v343
    %345 = vmatmul.f32.gmra.mxu0 %v307
    %v346 = vpop.f32.mrf.mxu0
    %v347 = vadd.f32 0.0, %v346
    %348 = vmatmul.f32.gmra.mxu0 %v308
    %v349 = vpop.f32.mrf.mxu0
    %v350 = vadd.f32 0.0, %v349
    %351 = vmatmul.f32.gmra.mxu0 %v309
    %v352 = vpop.f32.mrf.mxu0
    %v353 = vadd.f32 0.0, %v352
    %354 = vdwg.mxu0
    %s355 = scalar_lea.vmem %s3, 128
    %v356 = vld [vmem:[%s355] sm:$0xff]
    %v357 = vld [vmem:[%s355 + $0x8] sm:$0xff]
    %v358 = vld [vmem:[%s355 + $0x10] sm:$0xff]
    %v359 = vld [vmem:[%s355 + $0x18] sm:$0xff]
    %v360 = vld [vmem:[%s355 + $0x20] sm:$0xff]
    %v361 = vld [vmem:[%s355 + $0x28] sm:$0xff]
    %v362 = vld [vmem:[%s355 + $0x30] sm:$0xff]
    %v363 = vld [vmem:[%s355 + $0x38] sm:$0xff]
    %v364 = vld [vmem:[%s355 + $0x40] sm:$0xff]
    %v365 = vld [vmem:[%s355 + $0x48] sm:$0xff]
    %v366 = vld [vmem:[%s355 + $0x50] sm:$0xff]
    %v367 = vld [vmem:[%s355 + $0x58] sm:$0xff]
    %v368 = vld [vmem:[%s355 + $0x60] sm:$0xff]
    %v369 = vld [vmem:[%s355 + $0x68] sm:$0xff]
    %v370 = vld [vmem:[%s355 + $0x70] sm:$0xff]
    %v371 = vld [vmem:[%s355 + $0x78] sm:$0xff]
    %372 = vmatpush.msra.mxu0 %v371
    %373 = vmatpush.msra.mxu0 %v370
    %374 = vmatpush.msra.mxu0 %v369
    %375 = vmatpush.msra.mxu0 %v368
    %376 = vmatpush.msra.mxu0 %v367
    %377 = vmatpush.msra.mxu0 %v366
    %378 = vmatpush.msra.mxu0 %v365
    %379 = vmatpush.msra.mxu0 %v364
    %380 = vmatpush.msra.mxu0 %v363
    %381 = vmatpush.msra.mxu0 %v362
    %382 = vmatpush.msra.mxu0 %v361
    %383 = vmatpush.msra.mxu0 %v360
    %384 = vmatpush.msra.mxu0 %v359
    %385 = vmatpush.msra.mxu0 %v358
    %386 = vmatpush.msra.mxu0 %v357
    %387 = vmatpush.msra.mxu0 %v356
    %388 = vmatmul.f32.gmra.mxu0 %v306
    %v389 = vpop.f32.mrf.mxu0
    %v390 = vadd.f32 0.0, %v389
    %391 = vmatmul.f32.gmra.mxu0 %v307
    %v392 = vpop.f32.mrf.mxu0
    %v393 = vadd.f32 0.0, %v392
    %394 = vmatmul.f32.gmra.mxu0 %v308
    %v395 = vpop.f32.mrf.mxu0
    %v396 = vadd.f32 0.0, %v395
    %397 = vmatmul.f32.gmra.mxu0 %v309
    %v398 = vpop.f32.mrf.mxu0
    %v399 = vadd.f32 0.0, %v398
    %400 = vdwg.mxu0
    %s401 = scalar_lea.vmem %s3, 256
    %v402 = vld [vmem:[%s401] sm:$0xff]
    %v403 = vld [vmem:[%s401 + $0x8] sm:$0xff]
    %v404 = vld [vmem:[%s401 + $0x10] sm:$0xff]
    %v405 = vld [vmem:[%s401 + $0x18] sm:$0xff]
    %v406 = vld [vmem:[%s401 + $0x20] sm:$0xff]
    %v407 = vld [vmem:[%s401 + $0x28] sm:$0xff]
    %v408 = vld [vmem:[%s401 + $0x30] sm:$0xff]
    %v409 = vld [vmem:[%s401 + $0x38] sm:$0xff]
    %v410 = vld [vmem:[%s401 + $0x40] sm:$0xff]
    %v411 = vld [vmem:[%s401 + $0x48] sm:$0xff]
    %v412 = vld [vmem:[%s401 + $0x50] sm:$0xff]
    %v413 = vld [vmem:[%s401 + $0x58] sm:$0xff]
    %v414 = vld [vmem:[%s401 + $0x60] sm:$0xff]
    %v415 = vld [vmem:[%s401 + $0x68] sm:$0xff]
    %v416 = vld [vmem:[%s401 + $0x70] sm:$0xff]
    %v417 = vld [vmem:[%s401 + $0x78] sm:$0xff]
    %418 = vmatpush.msra.mxu0 %v417
    %419 = vmatpush.msra.mxu0 %v416
    %420 = vmatpush.msra.mxu0 %v415
    %421 = vmatpush.msra.mxu0 %v414
    %422 = vmatpush.msra.mxu0 %v413
    %423 = vmatpush.msra.mxu0 %v412
    %424 = vmatpush.msra.mxu0 %v411
    %425 = vmatpush.msra.mxu0 %v410
    %426 = vmatpush.msra.mxu0 %v409
    %427 = vmatpush.msra.mxu0 %v408
    %428 = vmatpush.msra.mxu0 %v407
    %429 = vmatpush.msra.mxu0 %v406
    %430 = vmatpush.msra.mxu0 %v405
    %431 = vmatpush.msra.mxu0 %v404
    %432 = vmatpush.msra.mxu0 %v403
    %433 = vmatpush.msra.mxu0 %v402
    %434 = vmatmul.f32.gmra.mxu0 %v306
    %v435 = vpop.f32.mrf.mxu0
    %v436 = vadd.f32 0.0, %v435
    %437 = vmatmul.f32.gmra.mxu0 %v307
    %v438 = vpop.f32.mrf.mxu0
    %v439 = vadd.f32 0.0, %v438
    %440 = vmatmul.f32.gmra.mxu0 %v308
    %v441 = vpop.f32.mrf.mxu0
    %v442 = vadd.f32 0.0, %v441
    %443 = vmatmul.f32.gmra.mxu0 %v309
    %v444 = vpop.f32.mrf.mxu0
    %v445 = vadd.f32 0.0, %v444
    %446 = vdwg.mxu0
    %447 = vmatpush.msra.mxu0 0.0
    %448 = vmatpush.msra.mxu0 0.0
    %449 = vmatpush.msra.mxu0 0.0
    %450 = vmatpush.msra.mxu0 0.0
    %451 = vmatpush.msra.mxu0 0.0
    %452 = vmatpush.msra.mxu0 0.0
    %453 = vmatpush.msra.mxu0 0.0
    %454 = vmatpush.msra.mxu0 0.0
    %455 = vmatpush.msra.mxu0 0.0
    %456 = vmatpush.msra.mxu0 0.0
    %457 = vmatpush.msra.mxu0 0.0
    %458 = vmatpush.msra.mxu0 0.0
    %459 = vmatpush.msra.mxu0 %v353
    %460 = vmatpush.msra.mxu0 %v350
    %461 = vmatpush.msra.mxu0 %v347
    %462 = vmatpush.msra.mxu0 %v344
    %463 = vmatmul.f32.gmra.mxu0 %v209
    %v464 = vpop.f32.mrf.mxu0
    %v465 = vadd.f32 %v390, %v464
    %466 = vmatmul.f32.gmra.mxu0 %v212
    %v467 = vpop.f32.mrf.mxu0
    %v468 = vadd.f32 %v393, %v467
    %469 = vmatmul.f32.gmra.mxu0 %v215
    %v470 = vpop.f32.mrf.mxu0
    %v471 = vadd.f32 %v396, %v470
    %472 = vmatmul.f32.gmra.mxu0 %v218
    %v473 = vpop.f32.mrf.mxu0
    %v474 = vadd.f32 %v399, %v473
    %475 = vdwg.mxu0
    %476 = vmatpush.msra.mxu0 0.0
    %477 = vmatpush.msra.mxu0 0.0
    %478 = vmatpush.msra.mxu0 0.0
    %479 = vmatpush.msra.mxu0 0.0
    %480 = vmatpush.msra.mxu0 0.0
    %481 = vmatpush.msra.mxu0 0.0
    %482 = vmatpush.msra.mxu0 0.0
    %483 = vmatpush.msra.mxu0 0.0
    %484 = vmatpush.msra.mxu0 0.0
    %485 = vmatpush.msra.mxu0 0.0
    %486 = vmatpush.msra.mxu0 0.0
    %487 = vmatpush.msra.mxu0 0.0
    %488 = vmatpush.msra.mxu0 %v445
    %489 = vmatpush.msra.mxu0 %v442
    %490 = vmatpush.msra.mxu0 %v439
    %491 = vmatpush.msra.mxu0 %v436
    %492 = vmatmul.f32.gmra.mxu0 %v255
    %v493 = vpop.f32.mrf.mxu0
    %v494 = vadd.f32 0.0, %v493
    %495 = vmatmul.f32.gmra.mxu0 %v258
    %v496 = vpop.f32.mrf.mxu0
    %v497 = vadd.f32 0.0, %v496
    %498 = vmatmul.f32.gmra.mxu0 %v261
    %v499 = vpop.f32.mrf.mxu0
    %v500 = vadd.f32 0.0, %v499
    %501 = vmatmul.f32.gmra.mxu0 %v264
    %v502 = vpop.f32.mrf.mxu0
    %v503 = vadd.f32 0.0, %v502
    %504 = vdwg.mxu0
    %v505 = vadd.f32 %v465, %v494
    %v506 = vadd.f32 %v468, %v497
    %v507 = vadd.f32 %v471, %v500
    %v508 = vadd.f32 %v474, %v503
    %v510 = vperm.slane %v81, 0
    %v512 = vadd.f32 %v505, %v510
    %v513 = vadd.f32 %v506, %v510
    %v514 = vadd.f32 %v507, %v510
    %v515 = vadd.f32 %v508, %v510
    %v516 = vmax.f32 %v512, 0.0
    %v517 = vmax.f32 %v513, 0.0
    %v518 = vmax.f32 %v514, 0.0
    %v519 = vmax.f32 %v515, 0.0
    %v520 = vld [vmem:[#allocation2] sm:$0xff]
    %v521 = vld [vmem:[#allocation2 + $0x8] sm:$0xff]
    %v522 = vld [vmem:[#allocation2 + $0x10] sm:$0xff]
    %v523 = vld [vmem:[#allocation2 + $0x18] sm:$0xff]
    %v524 = vld [vmem:[#allocation2 + $0x20] sm:$0xff]
    %v525 = vld [vmem:[#allocation2 + $0x28] sm:$0xff]
    %v526 = vld [vmem:[#allocation2 + $0x30] sm:$0xff]
    %v527 = vld [vmem:[#allocation2 + $0x38] sm:$0xff]
    %v528 = vld [vmem:[#allocation2 + $0x40] sm:$0xff]
    %v529 = vld [vmem:[#allocation2 + $0x48] sm:$0xff]
    %v530 = vld [vmem:[#allocation2 + $0x50] sm:$0xff]
    %v531 = vld [vmem:[#allocation2 + $0x58] sm:$0xff]
    %v532 = vld [vmem:[#allocation2 + $0x60] sm:$0xff]
    %v533 = vld [vmem:[#allocation2 + $0x68] sm:$0xff]
    %v534 = vld [vmem:[#allocation2 + $0x70] sm:$0xff]
    %v535 = vld [vmem:[#allocation2 + $0x78] sm:$0xff]
    %536 = vmatpush.msra.mxu0 %v535
    %537 = vmatpush.msra.mxu0 %v534
    %538 = vmatpush.msra.mxu0 %v533
    %539 = vmatpush.msra.mxu0 %v532
    %540 = vmatpush.msra.mxu0 %v531
    %541 = vmatpush.msra.mxu0 %v530
    %542 = vmatpush.msra.mxu0 %v529
    %543 = vmatpush.msra.mxu0 %v528
    %544 = vmatpush.msra.mxu0 %v527
    %545 = vmatpush.msra.mxu0 %v526
    %546 = vmatpush.msra.mxu0 %v525
    %547 = vmatpush.msra.mxu0 %v524
    %548 = vmatpush.msra.mxu0 %v523
    %549 = vmatpush.msra.mxu0 %v522
    %550 = vmatpush.msra.mxu0 %v521
    %551 = vmatpush.msra.mxu0 %v520
    %552 = vmatmul.f32.gmra.mxu0 %v516
    %v553 = vpop.f32.mrf.mxu0
    %v554 = vadd.f32 0.0, %v553
    %555 = vmatmul.f32.gmra.mxu0 %v517
    %v556 = vpop.f32.mrf.mxu0
    %v557 = vadd.f32 0.0, %v556
    %558 = vmatmul.f32.gmra.mxu0 %v518
    %v559 = vpop.f32.mrf.mxu0
    %v560 = vadd.f32 0.0, %v559
    %561 = vmatmul.f32.gmra.mxu0 %v519
    %v562 = vpop.f32.mrf.mxu0
    %v563 = vadd.f32 0.0, %v562
    %564 = vdwg.mxu0
    %s565 = scalar_lea.vmem [#allocation2], 128
    %v566 = vld [vmem:[%s565] sm:$0xff]
    %v567 = vld [vmem:[%s565 + $0x8] sm:$0xff]
    %v568 = vld [vmem:[%s565 + $0x10] sm:$0xff]
    %v569 = vld [vmem:[%s565 + $0x18] sm:$0xff]
    %v570 = vld [vmem:[%s565 + $0x20] sm:$0xff]
    %v571 = vld [vmem:[%s565 + $0x28] sm:$0xff]
    %v572 = vld [vmem:[%s565 + $0x30] sm:$0xff]
    %v573 = vld [vmem:[%s565 + $0x38] sm:$0xff]
    %v574 = vld [vmem:[%s565 + $0x40] sm:$0xff]
    %v575 = vld [vmem:[%s565 + $0x48] sm:$0xff]
    %v576 = vld [vmem:[%s565 + $0x50] sm:$0xff]
    %v577 = vld [vmem:[%s565 + $0x58] sm:$0xff]
    %v578 = vld [vmem:[%s565 + $0x60] sm:$0xff]
    %v579 = vld [vmem:[%s565 + $0x68] sm:$0xff]
    %v580 = vld [vmem:[%s565 + $0x70] sm:$0xff]
    %v581 = vld [vmem:[%s565 + $0x78] sm:$0xff]
    %582 = vmatpush.msra.mxu0 %v581
    %583 = vmatpush.msra.mxu0 %v580
    %584 = vmatpush.msra.mxu0 %v579
    %585 = vmatpush.msra.mxu0 %v578
    %586 = vmatpush.msra.mxu0 %v577
    %587 = vmatpush.msra.mxu0 %v576
    %588 = vmatpush.msra.mxu0 %v575
    %589 = vmatpush.msra.mxu0 %v574
    %590 = vmatpush.msra.mxu0 %v573
    %591 = vmatpush.msra.mxu0 %v572
    %592 = vmatpush.msra.mxu0 %v571
    %593 = vmatpush.msra.mxu0 %v570
    %594 = vmatpush.msra.mxu0 %v569
    %595 = vmatpush.msra.mxu0 %v568
    %596 = vmatpush.msra.mxu0 %v567
    %597 = vmatpush.msra.mxu0 %v566
    %598 = vmatmul.f32.gmra.mxu0 %v516
    %v599 = vpop.f32.mrf.mxu0
    %v600 = vadd.f32 0.0, %v599
    %601 = vmatmul.f32.gmra.mxu0 %v517
    %v602 = vpop.f32.mrf.mxu0
    %v603 = vadd.f32 0.0, %v602
    %604 = vmatmul.f32.gmra.mxu0 %v518
    %v605 = vpop.f32.mrf.mxu0
    %v606 = vadd.f32 0.0, %v605
    %607 = vmatmul.f32.gmra.mxu0 %v519
    %v608 = vpop.f32.mrf.mxu0
    %v609 = vadd.f32 0.0, %v608
    %610 = vdwg.mxu0
    %s611 = scalar_lea.vmem [#allocation2], 256
    %v612 = vld [vmem:[%s611] sm:$0xff]
    %v613 = vld [vmem:[%s611 + $0x8] sm:$0xff]
    %v614 = vld [vmem:[%s611 + $0x10] sm:$0xff]
    %v615 = vld [vmem:[%s611 + $0x18] sm:$0xff]
    %v616 = vld [vmem:[%s611 + $0x20] sm:$0xff]
    %v617 = vld [vmem:[%s611 + $0x28] sm:$0xff]
    %v618 = vld [vmem:[%s611 + $0x30] sm:$0xff]
    %v619 = vld [vmem:[%s611 + $0x38] sm:$0xff]
    %v620 = vld [vmem:[%s611 + $0x40] sm:$0xff]
    %v621 = vld [vmem:[%s611 + $0x48] sm:$0xff]
    %v622 = vld [vmem:[%s611 + $0x50] sm:$0xff]
    %v623 = vld [vmem:[%s611 + $0x58] sm:$0xff]
    %v624 = vld [vmem:[%s611 + $0x60] sm:$0xff]
    %v625 = vld [vmem:[%s611 + $0x68] sm:$0xff]
    %v626 = vld [vmem:[%s611 + $0x70] sm:$0xff]
    %v627 = vld [vmem:[%s611 + $0x78] sm:$0xff]
    %628 = vmatpush.msra.mxu0 %v627
    %629 = vmatpush.msra.mxu0 %v626
    %630 = vmatpush.msra.mxu0 %v625
    %631 = vmatpush.msra.mxu0 %v624
    %632 = vmatpush.msra.mxu0 %v623
    %633 = vmatpush.msra.mxu0 %v622
    %634 = vmatpush.msra.mxu0 %v621
    %635 = vmatpush.msra.mxu0 %v620
    %636 = vmatpush.msra.mxu0 %v619
    %637 = vmatpush.msra.mxu0 %v618
    %638 = vmatpush.msra.mxu0 %v617
    %639 = vmatpush.msra.mxu0 %v616
    %640 = vmatpush.msra.mxu0 %v615
    %641 = vmatpush.msra.mxu0 %v614
    %642 = vmatpush.msra.mxu0 %v613
    %643 = vmatpush.msra.mxu0 %v612
    %644 = vmatmul.f32.gmra.mxu0 %v516
    %v645 = vpop.f32.mrf.mxu0
    %v646 = vadd.f32 0.0, %v645
    %647 = vmatmul.f32.gmra.mxu0 %v517
    %v648 = vpop.f32.mrf.mxu0
    %v649 = vadd.f32 0.0, %v648
    %650 = vmatmul.f32.gmra.mxu0 %v518
    %v651 = vpop.f32.mrf.mxu0
    %v652 = vadd.f32 0.0, %v651
    %653 = vmatmul.f32.gmra.mxu0 %v519
    %v654 = vpop.f32.mrf.mxu0
    %v655 = vadd.f32 0.0, %v654
    %656 = vdwg.mxu0
    %657 = vmatpush.msra.mxu0 0.0
    %658 = vmatpush.msra.mxu0 0.0
    %659 = vmatpush.msra.mxu0 0.0
    %660 = vmatpush.msra.mxu0 0.0
    %661 = vmatpush.msra.mxu0 0.0
    %662 = vmatpush.msra.mxu0 0.0
    %663 = vmatpush.msra.mxu0 0.0
    %664 = vmatpush.msra.mxu0 0.0
    %665 = vmatpush.msra.mxu0 0.0
    %666 = vmatpush.msra.mxu0 0.0
    %667 = vmatpush.msra.mxu0 0.0
    %668 = vmatpush.msra.mxu0 0.0
    %669 = vmatpush.msra.mxu0 %v563
    %670 = vmatpush.msra.mxu0 %v560
    %671 = vmatpush.msra.mxu0 %v557
    %672 = vmatpush.msra.mxu0 %v554
    %673 = vmatmul.f32.gmra.mxu0 %v209
    %v674 = vpop.f32.mrf.mxu0
    %v675 = vadd.f32 %v600, %v674
    %676 = vmatmul.f32.gmra.mxu0 %v212
    %v677 = vpop.f32.mrf.mxu0
    %v678 = vadd.f32 %v603, %v677
    %679 = vmatmul.f32.gmra.mxu0 %v215
    %v680 = vpop.f32.mrf.mxu0
    %v681 = vadd.f32 %v606, %v680
    %682 = vmatmul.f32.gmra.mxu0 %v218
    %v683 = vpop.f32.mrf.mxu0
    %v684 = vadd.f32 %v609, %v683
    %685 = vdwg.mxu0
    %686 = vmatpush.msra.mxu0 0.0
    %687 = vmatpush.msra.mxu0 0.0
    %688 = vmatpush.msra.mxu0 0.0
    %689 = vmatpush.msra.mxu0 0.0
    %690 = vmatpush.msra.mxu0 0.0
    %691 = vmatpush.msra.mxu0 0.0
    %692 = vmatpush.msra.mxu0 0.0
    %693 = vmatpush.msra.mxu0 0.0
    %694 = vmatpush.msra.mxu0 0.0
    %695 = vmatpush.msra.mxu0 0.0
    %696 = vmatpush.msra.mxu0 0.0
    %697 = vmatpush.msra.mxu0 0.0
    %698 = vmatpush.msra.mxu0 %v655
    %699 = vmatpush.msra.mxu0 %v652
    %700 = vmatpush.msra.mxu0 %v649
    %701 = vmatpush.msra.mxu0 %v646
    %702 = vmatmul.f32.gmra.mxu0 %v255
    %v703 = vpop.f32.mrf.mxu0
    %v704 = vadd.f32 0.0, %v703
    %705 = vmatmul.f32.gmra.mxu0 %v258
    %v706 = vpop.f32.mrf.mxu0
    %v707 = vadd.f32 0.0, %v706
    %708 = vmatmul.f32.gmra.mxu0 %v261
    %v709 = vpop.f32.mrf.mxu0
    %v710 = vadd.f32 0.0, %v709
    %711 = vmatmul.f32.gmra.mxu0 %v264
    %v712 = vpop.f32.mrf.mxu0
    %v713 = vadd.f32 0.0, %v712
    %714 = vdwg.mxu0
    %v715 = vadd.f32 %v675, %v704
    %v716 = vadd.f32 %v678, %v707
    %v717 = vadd.f32 %v681, %v710
    %v718 = vadd.f32 %v684, %v713
    %v720 = vperm.slane %v82, 0
    %v722 = vadd.f32 %v715, %v720
    %v723 = vadd.f32 %v716, %v720
    %v724 = vadd.f32 %v717, %v720
    %v725 = vadd.f32 %v718, %v720
    %v726 = vadd.f32 %v722, %v306
    %v727 = vadd.f32 %v723, %v307
    %v728 = vadd.f32 %v724, %v308
    %v729 = vadd.f32 %v725, %v309
    %v730 = vmax.f32 %v726, 0.0
    %v731 = vmax.f32 %v727, 0.0
    %v732 = vmax.f32 %v728, 0.0
    %v733 = vmax.f32 %v729, 0.0
    %734 = vst [vmem:[%s12] sm:$0xff] %v730
    %735 = vst [vmem:[%s12 + $0x8] sm:$0xff] %v731
    %736 = vst [vmem:[%s12 + $0x10] sm:$0xff] %v732
    %737 = vst [vmem:[%s12 + $0x18] sm:$0xff] %v733
    %v738 = vld [vmem:[%s8] sm:$0x3]
    %v740 = vsel %vm207, %v738, 0
    %742 = vmatpush.msra.mxu0 0.0
    %743 = vmatpush.msra.mxu0 0.0
    %744 = vmatpush.msra.mxu0 0.0
    %745 = vmatpush.msra.mxu0 0.0
    %746 = vmatpush.msra.mxu0 0.0
    %747 = vmatpush.msra.mxu0 0.0
    %748 = vmatpush.msra.mxu0 0.0
    %749 = vmatpush.msra.mxu0 0.0
    %750 = vmatpush.msra.mxu0 0.0
    %751 = vmatpush.msra.mxu0 0.0
    %752 = vmatpush.msra.mxu0 0.0
    %753 = vmatpush.msra.mxu0 0.0
    %754 = vmatpush.msra.mxu0 %v733
    %755 = vmatpush.msra.mxu0 %v732
    %756 = vmatpush.msra.mxu0 %v731
    %757 = vmatpush.msra.mxu0 %v730
    %758 = vmatmul.f32.gmra.mxu0 %v740
    %v759 = vpop.f32.mrf.mxu0
    %v760 = vadd.f32 0.0, %v759
    %761 = vdwg.mxu0
    %v762 = vld [vmem:[%s9] sm:$0xff]
    %v763 = vld [vmem:[%s9 + $0x8] sm:$0xff]
    %v764 = vld [vmem:[%s9 + $0x10] sm:$0xff]
    %v765 = vld [vmem:[%s9 + $0x18] sm:$0xff]
    %v766 = vld [vmem:[%s9 + $0x20] sm:$0xff]
    %v767 = vld [vmem:[%s9 + $0x28] sm:$0xff]
    %v768 = vld [vmem:[%s9 + $0x30] sm:$0xff]
    %v769 = vld [vmem:[%s9 + $0x38] sm:$0xff]
    %v770 = vld [vmem:[%s9 + $0x40] sm:$0xff]
    %v771 = vld [vmem:[%s9 + $0x48] sm:$0xff]
    %v772 = vld [vmem:[%s9 + $0x50] sm:$0xff]
    %v773 = vld [vmem:[%s9 + $0x58] sm:$0xff]
    %v774 = vld [vmem:[%s9 + $0x60] sm:$0xff]
    %v775 = vld [vmem:[%s9 + $0x68] sm:$0xff]
    %v776 = vld [vmem:[%s9 + $0x70] sm:$0xff]
    %v777 = vld [vmem:[%s9 + $0x78] sm:$0xff]
    %778 = vmatpush.msra.mxu0 %v777
    %779 = vmatpush.msra.mxu0 %v776
    %780 = vmatpush.msra.mxu0 %v775
    %781 = vmatpush.msra.mxu0 %v774
    %782 = vmatpush.msra.mxu0 %v773
    %783 = vmatpush.msra.mxu0 %v772
    %784 = vmatpush.msra.mxu0 %v771
    %785 = vmatpush.msra.mxu0 %v770
    %786 = vmatpush.msra.mxu0 %v769
    %787 = vmatpush.msra.mxu0 %v768
    %788 = vmatpush.msra.mxu0 %v767
    %789 = vmatpush.msra.mxu0 %v766
    %790 = vmatpush.msra.mxu0 %v765
    %791 = vmatpush.msra.mxu0 %v764
    %792 = vmatpush.msra.mxu0 %v763
    %793 = vmatpush.msra.mxu0 %v762
    %794 = vmatmul.f32.gmra.mxu0 %v760
    %v795 = vpop.f32.mrf.mxu0
    %v796 = vadd.f32 0.0, %v795
    %797 = vdwg.mxu0
    %v798 = vld [vmem:[%s10] sm:$0xff]
    %v799 = vld [vmem:[%s11] sm:$0x1]
    %v801 = vperm.slane %v799, 0
    %vm803 = vcmask 64512
    %v805 = vsel %vm803, %v796, 0
    %807 = vmatpush.msra.mxu0 0.0
    %808 = vmatpush.msra.mxu0 0.0
    %809 = vmatpush.msra.mxu0 0.0
    %810 = vmatpush.msra.mxu0 0.0
    %811 = vmatpush.msra.mxu0 0.0
    %812 = vmatpush.msra.mxu0 0.0
    %813 = vmatpush.msra.mxu0 0.0
    %814 = vmatpush.msra.mxu0 0.0
    %815 = vmatpush.msra.mxu0 0.0
    %816 = vmatpush.msra.mxu0 0.0
    %817 = vmatpush.msra.mxu0 0.0
    %818 = vmatpush.msra.mxu0 0.0
    %819 = vmatpush.msra.mxu0 0.0
    %820 = vmatpush.msra.mxu0 0.0
    %821 = vmatpush.msra.mxu0 0.0
    %822 = vmatpush.msra.mxu0 %v798
    %823 = vmatmul.f32.gmra.mxu0 %v805
    %v824 = vpop.f32.mrf.mxu0
    %v825 = vadd.f32 %v801, %v824
    %826 = vdwg.mxu0
    %vm827 = vcmask 74752
    %v828 = vsel %vm827, %v825, -inf
    %829 = vmax.xlane.f32.xlu0 %v828
    %v830 = vpop.xlane.xlu0 %829
    %v831 = vsub.f32 %v825, %v830
    %v832 = vmul.f32 %v831, 1.442695
    %v833 = vpow.pop %v832
    %v834 = vsel %vm827, %v833, 0.0
    %835 = vadd.xlane.f32.xlu0 %v834
    %v836 = vpop.xlane.xlu0 %835
    %v837 = vrcp.pop %v836
    %v838 = vmul.f32 %v836, %v837
    %v839 = vsub.f32 1.0, %v838
    %v840 = vmul.f32 %v837, %v839
    %v841 = vadd.f32 %v837, %v840
    %vm842 = vweird.f32 %v836
    %vm843 = vweird.f32 %v837
    %vm844 = vmor %vm842, %vm843
    %v845 = vsel %vm844, %v837, %v841
    %v846 = vand.u32 2147483647, %v836
    %vm847 = vcmp.eq.f32.partialorder %v846, 8.507059e+37
    %v848 = vand.u32 %v836, 2147483648
    %v849 = vor.u32 1.1754944e-38, %v848
    %v850 = vsel %vm847, %v849, %v845
    %v851 = vmul.f32 %v833, %v850
    %v852 = vlaneseq
    %v853 = vshrl.u32 %v852, 7
    %v854 = vlaneseq
    %v855 = vand.u32 %v854, 127
    %v856 = vmul.u32 %v853, 10
    %v857 = vadd.s32 %v856, %v855
    %v858 = vsel %vm827, %v851, -inf
    %859 = vmax.xlane.f32.xlu0 %v858
    %v860 = vpop.xlane.xlu0 %859
    %v861 = vrot.slane %v860, 4
    %v862 = vmax.f32 %v860, %v861
    %v863 = vrot.slane %v862, 2
    %v864 = vmax.f32 %v862, %v863
    %v865 = vrot.slane %v864, 1
    %v866 = vmax.f32 %v864, %v865
    %s867 = vtos %v866
    %v868 = vstv %s867
    %vm869 = vcmp.eq.f32.partialorder %v851, %v868
    %v870 = vsel %vm869, %v857, 20
    %v871 = vsel %vm827, %v870, 2147483647
    %v872 = vand.u32 %v871, 65535
    %v873 = vshra.s32 %v871, 16
    %v874 = vcvt.s32.f32 %v872
    %v875 = vcvt.s32.f32 %v873
    %876 = vmin.xlane.f32.xlu0 %v875
    %v877 = vpop.xlane.xlu0 %876
    %vm878 = vcmp.eq.f32.partialorder %v875, %v877
    %v879 = vsel %vm878, %v874, inf
    %880 = vmin.xlane.f32.xlu0 %v879
    %v881 = vpop.xlane.xlu0 %880
    %v882 = vcvt.f32.s32 %v881
    %v883 = vcvt.f32.s32 %v877
    %v884 = vshll.u32 %v883, 16
    %v885 = vadd.s32 %v884, %v882
    %v886 = vrot.slane %v885, 4
    %vm887 = vcmp.lt.s32.totalorder %v885, %v886
    %v888 = vsel %vm887, %v885, %v886
    %v889 = vrot.slane %v888, 2
    %vm890 = vcmp.lt.s32.totalorder %v888, %v889
    %v891 = vsel %vm890, %v888, %v889
    %v892 = vrot.slane %v891, 1
    %vm893 = vcmp.lt.s32.totalorder %v891, %v892
    %v894 = vsel %vm893, %v891, %v892
    %s895 = vtos %v894
    %v896 = vstv %s895
    %vm897 = vcmask 0
    %898 = vst.msk [vmem:[#allocation7] sm:$0x1] %vm897, %v896
    // Predicated region
    $region58: #{intermediate_rep_forward.1} parent=1 // pred_check
      _
    $region59: #{intermediate_rep_forward.1} parent=1 // pred_check_branch
      %900 = sbr.rel (0) target = $region61
    $region60: #{intermediate_rep_forward.1} parent=1 // pred_region
      _
    $region61: #{intermediate_rep_forward.1} parent=1 // pred_fallthru
      _
    // Predicated region
    $region62: #{intermediate_rep_forward.1} parent=1 // pred_check
      _
    $region63: #{intermediate_rep_forward.1} parent=1 // pred_check_branch
      %902 = sbr.rel (0) target = $region65
    $region64: #{intermediate_rep_forward.1} parent=1 // pred_region
      %904 = vsyncadd [#allocation4], 0
      %s906 = sshll.u32 [#allocation7], 4
      %s907 = int_to_ptr.vmem [resolvable:$true] %s906
      %s908 = sshll.u32 %s13, 4
      %s909 = int_to_ptr.hbm [resolvable:$true] %s908
      %911 = dma.vmem_to_hbm [thread:$0]  %s907, 16, %s909, [#allocation4]
    $region65: #{intermediate_rep_forward.1} parent=1 // pred_fallthru
      _
    // Predicated region
    $region66: #{intermediate_rep_forward.1} parent=1 // pred_check
      _
    $region67: #{intermediate_rep_forward.1} parent=1 // pred_check_branch
      %913 = sbr.rel (0) target = $region69
    $region68: #{intermediate_rep_forward.1} parent=1 // pred_region
      _
    $region69: #{intermediate_rep_forward.1} parent=1 // pred_fallthru
      _
    // Predicated region
    $region70: #{intermediate_rep_forward.1} parent=1 // pred_check
      _
    $region71: #{intermediate_rep_forward.1} parent=1 // pred_check_branch
      %915 = sbr.rel (0) target = $region73
    $region72: #{intermediate_rep_forward.1} parent=1 // pred_region
      %917 = dma.done [#allocation4], 16
    $region73: #{intermediate_rep_forward.1} parent=1 // pred_fallthru
      _
    %918 = vsyncpa [#allocation3], 1
    %919 = vsyncpa [#allocation6], 1
    %920 = vsyncpa [#allocation4], 1

</llo_original>
